<compile_context>
chip_gen: v6e
topology: v6e:2x2x1
jax: 0.10.0
libtpu: 0.0.40
codegen_flags: <defaults>
</compile_context>

<pallas_src>
import jax
import jax.numpy as jnp
from jax.experimental import pallas as pl
from jax.experimental.pallas import tpu as pltpu


def _cosine_sim_kernel(p_ref, q_ref, o_ref, pbuf, qbuf):
    # p_ref: [1, way, C, N]        proto, natural layout, resident across q-tiles
    # q_ref: [1, tile_q, C, N]     query tile, natural layout
    # o_ref: [1, tile_q, way*N, N] out[e, q, w*N+i, j]
    # pbuf : VMEM [way*N, C]       proto rows (w, i)
    # qbuf : VMEM [C, tile_q*N]    query cols (q, j)
    _, way, C, N = p_ref.shape
    tile_q = q_ref.shape[1]

    # ---- proto relayout: [way, C, N] -> rows (w, i): [way*N, C] -------------
    # `way` tiny 2-D transposes; rebuilt every step (cheap) so both grid axes
    # can stay "parallel" (no cross-step state).
    for w in range(way):
        pbuf[w * N:(w + 1) * N, :] = p_ref[0, w].T          # [N, C]

    # ---- query packing: [tile_q, C, N] -> cols (q, j): [C, tile_q*N] --------
    # Static-offset masked stores; keeps the MXU rhs lane-dense without any
    # wrapper-side transpose copy of the (large) query tensor.
    for qq in range(tile_q):
        qbuf[:, qq * N:(qq + 1) * N] = q_ref[0, qq]          # [C, N]

    p_mat = pbuf[...]                                        # [WN, C]
    q_mat = qbuf[...]                                        # [C, TQN]

    # One lane-dense MXU matmul per (episode, q-tile), f32 accumulation.
    sim = jnp.dot(p_mat, q_mat, preferred_element_type=jnp.float32)   # [WN, TQN]

    # Norms: square in native dtype, accumulate in f32 (no full f32 copies).
    ssq_p = jnp.sum(jnp.square(p_mat), axis=1, keepdims=True,
                    dtype=jnp.float32)                       # [WN, 1]
    ssq_q = jnp.sum(jnp.square(q_mat), axis=0, keepdims=True,
                    dtype=jnp.float32)                       # [1, TQN]

    # Factored reciprocals: tiny EUP vectors + VPU broadcasts instead of a
    # full-slab divide.  (eps per norm instead of on the product; ~1e-9 rel.)
    inv_p = 1.0 / (jnp.sqrt(ssq_p) + 1e-8)
    inv_q = 1.0 / (jnp.sqrt(ssq_q) + 1e-8)
    scaled = sim * inv_p * inv_q                             # [WN, TQN] f32

    # Un-pack per query so the HBM output layout is [E, Q, way*N, N] and the
    # wrapper reshape to [E, Q, way, N, N] is free (no output transpose copy).
    for qq in range(tile_q):
        o_ref[0, qq] = scaled[:, qq * N:(qq + 1) * N].astype(o_ref.dtype)


def similarity_layer(proto, query, metric="cosine", compute_dtype=None):
    """proto: [E, way, C, 1, N], query: [E, Q, C, 1, N] -> [E, Q, way, N, N]."""
    if metric != "cosine":
        # TODO(synk): 'l2' metric branch (1 - squared distance) not implemented here.
        raise NotImplementedError("only metric='cosine' is implemented")

    E, way, C, _, N = proto.shape
    Q = query.shape[1]
    WN = way * N

    # Free reshapes only (drop the size-1 dim); no transpose copies.
    p_sq = proto.reshape(E, way, C, N)
    q_sq = query.reshape(E, Q, C, N)
    if compute_dtype is not None:
        # bf16 here halves HBM traffic on all generations; keep default None so
        # the f32 1e-5 reference check below holds.
        p_sq = p_sq.astype(compute_dtype)
        q_sq = q_sq.astype(compute_dtype)
    dtype = p_sq.dtype

    # Q-tile: largest divisor of Q with tile_q*N <= 512 lanes.  Keeps the
    # natural-layout query block (N pads to 128 lanes in VMEM) well inside the
    # scoped-VMEM budget on every generation and gives v7x's two TensorCores a
    # second parallel grid axis.  At the test shape: tile_q = Q (single tile).
    max_lanes = 512
    tile_q = 1
    for d in range(1, Q + 1):
        if Q % d == 0 and d * N <= max_lanes:
            tile_q = d
    n_qt = Q // tile_q

    out = pl.pallas_call(
        _cosine_sim_kernel,
        out_shape=jax.ShapeDtypeStruct((E, Q, WN, N), dtype),
        grid_spec=pltpu.PrefetchScalarGridSpec(
            num_scalar_prefetch=0,
            grid=(E, n_qt),  # episodes x query tiles, both parallel
            in_specs=[
                # proto block index is constant across the q-tile axis, so the
                # pipeline skips its re-DMA between consecutive steps.
                pl.BlockSpec((1, way, C, N), lambda e, t: (e, 0, 0, 0)),
                pl.BlockSpec((1, tile_q, C, N), lambda e, t: (e, t, 0, 0)),
            ],
            out_specs=pl.BlockSpec((1, tile_q, WN, N), lambda e, t: (e, t, 0, 0)),
            scratch_shapes=[
                pltpu.VMEM((WN, C), dtype),          # packed proto rows
                pltpu.VMEM((C, tile_q * N), dtype),  # packed query cols
            ],
        ),
        compiler_params=pltpu.CompilerParams(
            dimension_semantics=("parallel", "parallel"),
            vmem_limit_bytes=32 * 1024 * 1024,  # v5e default (16 MiB) is too tight at DeepEMD scale
        ),
    )(p_sq, q_sq)

    # Pure reshape (row-major split of way*N), no copy: [E,Q,WN,N] -> [E,Q,way,N,N].
    return out.reshape(E, Q, way, N, N)


def _reference(proto, query):
    """Pure-JAX reference mirroring the PyTorch forward (cosine branch)."""
    p = proto[:, :, :, 0, :]                          # [E, way, C, N]
    q = query[:, :, :, 0, :]                          # [E, Q, C, N]
    sim = jnp.einsum("ewci,eqcj->eqwij", p, q)        # [E, Q, way, N, N]
    norm_p = jnp.linalg.norm(p, axis=2)               # [E, way, N]
    norm_q = jnp.linalg.norm(q, axis=2)               # [E, Q, N]
    denom = norm_p[:, None, :, :, None] * norm_q[:, :, None, None, :] + 1e-8
    return sim / denom


if __name__ == "__main__":
    key = jax.random.PRNGKey(0)
    kp, kq = jax.random.split(key)

    # Small, module-consistent shapes:
    #   episode_size=2, way_num=4, query_num=2 (=> num_query=8), C=32, N=16
    E, way, query_num, C, N = 2, 4, 2, 32, 16
    Q = query_num * way

    proto = jax.random.normal(kp, (E, way, C, 1, N), dtype=jnp.float32)
    query = jax.random.normal(kq, (E, Q, C, 1, N), dtype=jnp.float32)

    out = similarity_layer(proto, query)
    out = jax.block_until_ready(out)

    ref = _reference(proto, query)
    assert out.shape == (E, Q, way, N, N)
    assert jnp.allclose(out, ref, atol=1e-5, rtol=1e-5)

    print("KERNEL_OK")
</pallas_src>

<mosaic_0001>
module attributes {stable_mosaic.version = 11 : i64} {
  func.func @_cosine_sim_kernel(%arg0: i32, %arg1: i32, %arg2: memref<1x4x32x16xf32, #tpu.memory_space<vmem>>, %arg3: memref<1x8x32x16xf32, #tpu.memory_space<vmem>>, %arg4: memref<1x8x64x16xf32, #tpu.memory_space<vmem>>, %arg5: memref<64x32xf32, #tpu.memory_space<vmem>>, %arg6: memref<32x128xf32, #tpu.memory_space<vmem>>) attributes {dimension_semantics = [#tpu.dimension_semantics<parallel>, #tpu.dimension_semantics<parallel>], iteration_bounds = array<i64: 2, 1>, scalar_prefetch = 0 : i64, scratch_operands = 2 : i64, tpu.core_type = #tpu.core_type<tc>, window_params = [{transform_indices = @transform_0, window_bounds = array<i64: 1, 4, 32, 16>}, {transform_indices = @transform_1, window_bounds = array<i64: 1, 8, 32, 16>}, {transform_indices = @transform_2, window_bounds = array<i64: 1, 8, 64, 16>}]} {
    %c0 = arith.constant 0 : index
    %c0_0 = arith.constant 0 : index
    %c0_1 = arith.constant 0 : index
    %c0_2 = arith.constant 0 : index
    %0 = vector.load %arg2[%c0, %c0_0, %c0_1, %c0_2] : memref<1x4x32x16xf32, #tpu.memory_space<vmem>>, vector<1x1x32x16xf32>
    %1 = vector.shape_cast %0 : vector<1x1x32x16xf32> to vector<32x16xf32>
    %2 = tpu.transpose %1, [1, 0] : vector<32x16xf32> -> vector<16x32xf32>
    %c0_3 = arith.constant 0 : index
    %c0_4 = arith.constant 0 : index
    %3 = vector.load %arg5[%c0_3, %c0_4] : memref<64x32xf32, #tpu.memory_space<vmem>>, vector<16x32xf32>
    tpu.vector_store %arg5[%c0_3, %c0_4], %2 {strides = array<i32>} : memref<64x32xf32, #tpu.memory_space<vmem>>, vector<16x32xf32>,
    %c0_5 = arith.constant 0 : index
    %c1 = arith.constant 1 : index
    %c0_6 = arith.constant 0 : index
    %c0_7 = arith.constant 0 : index
    %4 = vector.load %arg2[%c0_5, %c1, %c0_6, %c0_7] : memref<1x4x32x16xf32, #tpu.memory_space<vmem>>, vector<1x1x32x16xf32>
    %5 = vector.shape_cast %4 : vector<1x1x32x16xf32> to vector<32x16xf32>
    %6 = tpu.transpose %5, [1, 0] : vector<32x16xf32> -> vector<16x32xf32>
    %c16 = arith.constant 16 : index
    %c0_8 = arith.constant 0 : index
    %7 = vector.load %arg5[%c16, %c0_8] : memref<64x32xf32, #tpu.memory_space<vmem>>, vector<16x32xf32>
    tpu.vector_store %arg5[%c16, %c0_8], %6 {strides = array<i32>} : memref<64x32xf32, #tpu.memory_space<vmem>>, vector<16x32xf32>,
    %c0_9 = arith.constant 0 : index
    %c2 = arith.constant 2 : index
    %c0_10 = arith.constant 0 : index
    %c0_11 = arith.constant 0 : index
    %8 = vector.load %arg2[%c0_9, %c2, %c0_10, %c0_11] : memref<1x4x32x16xf32, #tpu.memory_space<vmem>>, vector<1x1x32x16xf32>
    %9 = vector.shape_cast %8 : vector<1x1x32x16xf32> to vector<32x16xf32>
    %10 = tpu.transpose %9, [1, 0] : vector<32x16xf32> -> vector<16x32xf32>
    %c32 = arith.constant 32 : index
    %c0_12 = arith.constant 0 : index
    %11 = vector.load %arg5[%c32, %c0_12] : memref<64x32xf32, #tpu.memory_space<vmem>>, vector<16x32xf32>
    tpu.vector_store %arg5[%c32, %c0_12], %10 {strides = array<i32>} : memref<64x32xf32, #tpu.memory_space<vmem>>, vector<16x32xf32>,
    %c0_13 = arith.constant 0 : index
    %c3 = arith.constant 3 : index
    %c0_14 = arith.constant 0 : index
    %c0_15 = arith.constant 0 : index
    %12 = vector.load %arg2[%c0_13, %c3, %c0_14, %c0_15] : memref<1x4x32x16xf32, #tpu.memory_space<vmem>>, vector<1x1x32x16xf32>
    %13 = vector.shape_cast %12 : vector<1x1x32x16xf32> to vector<32x16xf32>
    %14 = tpu.transpose %13, [1, 0] : vector<32x16xf32> -> vector<16x32xf32>
    %c48 = arith.constant 48 : index
    %c0_16 = arith.constant 0 : index
    %15 = vector.load %arg5[%c48, %c0_16] : memref<64x32xf32, #tpu.memory_space<vmem>>, vector<16x32xf32>
    tpu.vector_store %arg5[%c48, %c0_16], %14 {strides = array<i32>} : memref<64x32xf32, #tpu.memory_space<vmem>>, vector<16x32xf32>,
    %c0_17 = arith.constant 0 : index
    %c0_18 = arith.constant 0 : index
    %c0_19 = arith.constant 0 : index
    %c0_20 = arith.constant 0 : index
    %16 = vector.load %arg3[%c0_17, %c0_18, %c0_19, %c0_20] : memref<1x8x32x16xf32, #tpu.memory_space<vmem>>, vector<1x1x32x16xf32>
    %17 = vector.shape_cast %16 : vector<1x1x32x16xf32> to vector<32x16xf32>
    %c0_21 = arith.constant 0 : index
    %c0_22 = arith.constant 0 : index
    %18 = vector.load %arg6[%c0_21, %c0_22] : memref<32x128xf32, #tpu.memory_space<vmem>>, vector<32x16xf32>
    tpu.vector_store %arg6[%c0_21, %c0_22], %17 {strides = array<i32>} : memref<32x128xf32, #tpu.memory_space<vmem>>, vector<32x16xf32>,
    %c0_23 = arith.constant 0 : index
    %c1_24 = arith.constant 1 : index
    %c0_25 = arith.constant 0 : index
    %c0_26 = arith.constant 0 : index
    %19 = vector.load %arg3[%c0_23, %c1_24, %c0_25, %c0_26] : memref<1x8x32x16xf32, #tpu.memory_space<vmem>>, vector<1x1x32x16xf32>
    %20 = vector.shape_cast %19 : vector<1x1x32x16xf32> to vector<32x16xf32>
    %c0_27 = arith.constant 0 : index
    %c16_28 = arith.constant 16 : index
    %21 = vector.load %arg6[%c0_27, %c16_28] : memref<32x128xf32, #tpu.memory_space<vmem>>, vector<32x16xf32>
    tpu.vector_store %arg6[%c0_27, %c16_28], %20 {strides = array<i32>} : memref<32x128xf32, #tpu.memory_space<vmem>>, vector<32x16xf32>,
    %c0_29 = arith.constant 0 : index
    %c2_30 = arith.constant 2 : index
    %c0_31 = arith.constant 0 : index
    %c0_32 = arith.constant 0 : index
    %22 = vector.load %arg3[%c0_29, %c2_30, %c0_31, %c0_32] : memref<1x8x32x16xf32, #tpu.memory_space<vmem>>, vector<1x1x32x16xf32>
    %23 = vector.shape_cast %22 : vector<1x1x32x16xf32> to vector<32x16xf32>
    %c0_33 = arith.constant 0 : index
    %c32_34 = arith.constant 32 : index
    %24 = vector.load %arg6[%c0_33, %c32_34] : memref<32x128xf32, #tpu.memory_space<vmem>>, vector<32x16xf32>
    tpu.vector_store %arg6[%c0_33, %c32_34], %23 {strides = array<i32>} : memref<32x128xf32, #tpu.memory_space<vmem>>, vector<32x16xf32>,
    %c0_35 = arith.constant 0 : index
    %c3_36 = arith.constant 3 : index
    %c0_37 = arith.constant 0 : index
    %c0_38 = arith.constant 0 : index
    %25 = vector.load %arg3[%c0_35, %c3_36, %c0_37, %c0_38] : memref<1x8x32x16xf32, #tpu.memory_space<vmem>>, vector<1x1x32x16xf32>
    %26 = vector.shape_cast %25 : vector<1x1x32x16xf32> to vector<32x16xf32>
    %c0_39 = arith.constant 0 : index
    %c48_40 = arith.constant 48 : index
    %27 = vector.load %arg6[%c0_39, %c48_40] : memref<32x128xf32, #tpu.memory_space<vmem>>, vector<32x16xf32>
    tpu.vector_store %arg6[%c0_39, %c48_40], %26 {strides = array<i32>} : memref<32x128xf32, #tpu.memory_space<vmem>>, vector<32x16xf32>,
    %c0_41 = arith.constant 0 : index
    %c4 = arith.constant 4 : index
    %c0_42 = arith.constant 0 : index
    %c0_43 = arith.constant 0 : index
    %28 = vector.load %arg3[%c0_41, %c4, %c0_42, %c0_43] : memref<1x8x32x16xf32, #tpu.memory_space<vmem>>, vector<1x1x32x16xf32>
    %29 = vector.shape_cast %28 : vector<1x1x32x16xf32> to vector<32x16xf32>
    %c0_44 = arith.constant 0 : index
    %c64 = arith.constant 64 : index
    %30 = vector.load %arg6[%c0_44, %c64] : memref<32x128xf32, #tpu.memory_space<vmem>>, vector<32x16xf32>
    tpu.vector_store %arg6[%c0_44, %c64], %29 {strides = array<i32>} : memref<32x128xf32, #tpu.memory_space<vmem>>, vector<32x16xf32>,
    %c0_45 = arith.constant 0 : index
    %c5 = arith.constant 5 : index
    %c0_46 = arith.constant 0 : index
    %c0_47 = arith.constant 0 : index
    %31 = vector.load %arg3[%c0_45, %c5, %c0_46, %c0_47] : memref<1x8x32x16xf32, #tpu.memory_space<vmem>>, vector<1x1x32x16xf32>
    %32 = vector.shape_cast %31 : vector<1x1x32x16xf32> to vector<32x16xf32>
    %c0_48 = arith.constant 0 : index
    %c80 = arith.constant 80 : index
    %33 = vector.load %arg6[%c0_48, %c80] : memref<32x128xf32, #tpu.memory_space<vmem>>, vector<32x16xf32>
    tpu.vector_store %arg6[%c0_48, %c80], %32 {strides = array<i32>} : memref<32x128xf32, #tpu.memory_space<vmem>>, vector<32x16xf32>,
    %c0_49 = arith.constant 0 : index
    %c6 = arith.constant 6 : index
    %c0_50 = arith.constant 0 : index
    %c0_51 = arith.constant 0 : index
    %34 = vector.load %arg3[%c0_49, %c6, %c0_50, %c0_51] : memref<1x8x32x16xf32, #tpu.memory_space<vmem>>, vector<1x1x32x16xf32>
    %35 = vector.shape_cast %34 : vector<1x1x32x16xf32> to vector<32x16xf32>
    %c0_52 = arith.constant 0 : index
    %c96 = arith.constant 96 : index
    %36 = vector.load %arg6[%c0_52, %c96] : memref<32x128xf32, #tpu.memory_space<vmem>>, vector<32x16xf32>
    tpu.vector_store %arg6[%c0_52, %c96], %35 {strides = array<i32>} : memref<32x128xf32, #tpu.memory_space<vmem>>, vector<32x16xf32>,
    %c0_53 = arith.constant 0 : index
    %c7 = arith.constant 7 : index
    %c0_54 = arith.constant 0 : index
    %c0_55 = arith.constant 0 : index
    %37 = vector.load %arg3[%c0_53, %c7, %c0_54, %c0_55] : memref<1x8x32x16xf32, #tpu.memory_space<vmem>>, vector<1x1x32x16xf32>
    %38 = vector.shape_cast %37 : vector<1x1x32x16xf32> to vector<32x16xf32>
    %c0_56 = arith.constant 0 : index
    %c112 = arith.constant 112 : index
    %39 = vector.load %arg6[%c0_56, %c112] : memref<32x128xf32, #tpu.memory_space<vmem>>, vector<32x16xf32>
    tpu.vector_store %arg6[%c0_56, %c112], %38 {strides = array<i32>} : memref<32x128xf32, #tpu.memory_space<vmem>>, vector<32x16xf32>,
    %c0_57 = arith.constant 0 : index
    %c0_58 = arith.constant 0 : index
    %40 = vector.load %arg5[%c0_57, %c0_58] : memref<64x32xf32, #tpu.memory_space<vmem>>, vector<64x32xf32>
    %c0_59 = arith.constant 0 : index
    %c0_60 = arith.constant 0 : index
    %41 = vector.load %arg6[%c0_59, %c0_60] : memref<32x128xf32, #tpu.memory_space<vmem>>, vector<32x128xf32>
    %cst = arith.constant dense<0.000000e+00> : vector<64x128xf32>
    %42 = tpu.matmul %40, %41, %cst {dimension_numbers = #tpu.dot_dimension_numbers<[1], [0], [0], [1], [0, 0, 1, 1], [], []>} : vector<64x32xf32>, vector<32x128xf32>, vector<64x128xf32> -> vector<64x128xf32>
    %43 = arith.mulf %40, %40 : vector<64x32xf32>
    %cst_61 = arith.constant dense<0.000000e+00> : vector<64xf32>
    %44 = vector.multi_reduction <add>, %43, %cst_61 [1] : vector<64x32xf32> to vector<64xf32>
    %45 = vector.shape_cast %44 : vector<64xf32> to vector<64x1xf32>
    %46 = arith.mulf %41, %41 : vector<32x128xf32>
    %cst_62 = arith.constant dense<0.000000e+00> : vector<128xf32>
    %47 = vector.multi_reduction <add>, %46, %cst_62 [0] : vector<32x128xf32> to vector<128xf32>
    %48 = vector.shape_cast %47 : vector<128xf32> to vector<1x128xf32>
    %49 = math.sqrt %45 : vector<64x1xf32>
    %cst_63 = arith.constant 9.99999993E-9 : f32
    %50 = vector.broadcast %cst_63 : f32 to vector<64x1xf32>
    %51 = arith.addf %49, %50 : vector<64x1xf32>
    %cst_64 = arith.constant 1.000000e+00 : f32
    %52 = vector.broadcast %cst_64 : f32 to vector<64x1xf32>
    %53 = arith.divf %52, %51 : vector<64x1xf32>
    %54 = math.sqrt %48 : vector<1x128xf32>
    %cst_65 = arith.constant 9.99999993E-9 : f32
    %55 = vector.broadcast %cst_65 : f32 to vector<1x128xf32>
    %56 = arith.addf %54, %55 : vector<1x128xf32>
    %cst_66 = arith.constant 1.000000e+00 : f32
    %57 = vector.broadcast %cst_66 : f32 to vector<1x128xf32>
    %58 = arith.divf %57, %56 : vector<1x128xf32>
    %59 = vector.broadcast %53 : vector<64x1xf32> to vector<64x128xf32>
    %60 = arith.mulf %42, %59 : vector<64x128xf32>
    %61 = vector.broadcast %58 : vector<1x128xf32> to vector<64x128xf32>
    %62 = arith.mulf %60, %61 : vector<64x128xf32>
    %63 = vector.extract_strided_slice %62 {offsets = [0, 0], sizes = [64, 16], strides = [1, 1]} : vector<64x128xf32> to vector<64x16xf32>
    %c0_67 = arith.constant 0 : index
    %c0_68 = arith.constant 0 : index
    %c0_69 = arith.constant 0 : index
    %c0_70 = arith.constant 0 : index
    %64 = vector.load %arg4[%c0_67, %c0_68, %c0_69, %c0_70] : memref<1x8x64x16xf32, #tpu.memory_space<vmem>>, vector<1x1x64x16xf32>
    %65 = vector.shape_cast %64 : vector<1x1x64x16xf32> to vector<64x16xf32>
    %66 = vector.shape_cast %63 : vector<64x16xf32> to vector<1x1x64x16xf32>
    tpu.vector_store %arg4[%c0_67, %c0_68, %c0_69, %c0_70], %66 {strides = array<i32>} : memref<1x8x64x16xf32, #tpu.memory_space<vmem>>, vector<1x1x64x16xf32>,
    %67 = vector.extract_strided_slice %62 {offsets = [0, 16], sizes = [64, 16], strides = [1, 1]} : vector<64x128xf32> to vector<64x16xf32>
    %c0_71 = arith.constant 0 : index
    %c1_72 = arith.constant 1 : index
    %c0_73 = arith.constant 0 : index
    %c0_74 = arith.constant 0 : index
    %68 = vector.load %arg4[%c0_71, %c1_72, %c0_73, %c0_74] : memref<1x8x64x16xf32, #tpu.memory_space<vmem>>, vector<1x1x64x16xf32>
    %69 = vector.shape_cast %68 : vector<1x1x64x16xf32> to vector<64x16xf32>
    %70 = vector.shape_cast %67 : vector<64x16xf32> to vector<1x1x64x16xf32>
    tpu.vector_store %arg4[%c0_71, %c1_72, %c0_73, %c0_74], %70 {strides = array<i32>} : memref<1x8x64x16xf32, #tpu.memory_space<vmem>>, vector<1x1x64x16xf32>,
    %71 = vector.extract_strided_slice %62 {offsets = [0, 32], sizes = [64, 16], strides = [1, 1]} : vector<64x128xf32> to vector<64x16xf32>
    %c0_75 = arith.constant 0 : index
    %c2_76 = arith.constant 2 : index
    %c0_77 = arith.constant 0 : index
    %c0_78 = arith.constant 0 : index
    %72 = vector.load %arg4[%c0_75, %c2_76, %c0_77, %c0_78] : memref<1x8x64x16xf32, #tpu.memory_space<vmem>>, vector<1x1x64x16xf32>
    %73 = vector.shape_cast %72 : vector<1x1x64x16xf32> to vector<64x16xf32>
    %74 = vector.shape_cast %71 : vector<64x16xf32> to vector<1x1x64x16xf32>
    tpu.vector_store %arg4[%c0_75, %c2_76, %c0_77, %c0_78], %74 {strides = array<i32>} : memref<1x8x64x16xf32, #tpu.memory_space<vmem>>, vector<1x1x64x16xf32>,
    %75 = vector.extract_strided_slice %62 {offsets = [0, 48], sizes = [64, 16], strides = [1, 1]} : vector<64x128xf32> to vector<64x16xf32>
    %c0_79 = arith.constant 0 : index
    %c3_80 = arith.constant 3 : index
    %c0_81 = arith.constant 0 : index
    %c0_82 = arith.constant 0 : index
    %76 = vector.load %arg4[%c0_79, %c3_80, %c0_81, %c0_82] : memref<1x8x64x16xf32, #tpu.memory_space<vmem>>, vector<1x1x64x16xf32>
    %77 = vector.shape_cast %76 : vector<1x1x64x16xf32> to vector<64x16xf32>
    %78 = vector.shape_cast %75 : vector<64x16xf32> to vector<1x1x64x16xf32>
    tpu.vector_store %arg4[%c0_79, %c3_80, %c0_81, %c0_82], %78 {strides = array<i32>} : memref<1x8x64x16xf32, #tpu.memory_space<vmem>>, vector<1x1x64x16xf32>,
    %79 = vector.extract_strided_slice %62 {offsets = [0, 64], sizes = [64, 16], strides = [1, 1]} : vector<64x128xf32> to vector<64x16xf32>
    %c0_83 = arith.constant 0 : index
    %c4_84 = arith.constant 4 : index
    %c0_85 = arith.constant 0 : index
    %c0_86 = arith.constant 0 : index
    %80 = vector.load %arg4[%c0_83, %c4_84, %c0_85, %c0_86] : memref<1x8x64x16xf32, #tpu.memory_space<vmem>>, vector<1x1x64x16xf32>
    %81 = vector.shape_cast %80 : vector<1x1x64x16xf32> to vector<64x16xf32>
    %82 = vector.shape_cast %79 : vector<64x16xf32> to vector<1x1x64x16xf32>
    tpu.vector_store %arg4[%c0_83, %c4_84, %c0_85, %c0_86], %82 {strides = array<i32>} : memref<1x8x64x16xf32, #tpu.memory_space<vmem>>, vector<1x1x64x16xf32>,
    %83 = vector.extract_strided_slice %62 {offsets = [0, 80], sizes = [64, 16], strides = [1, 1]} : vector<64x128xf32> to vector<64x16xf32>
    %c0_87 = arith.constant 0 : index
    %c5_88 = arith.constant 5 : index
    %c0_89 = arith.constant 0 : index
    %c0_90 = arith.constant 0 : index
    %84 = vector.load %arg4[%c0_87, %c5_88, %c0_89, %c0_90] : memref<1x8x64x16xf32, #tpu.memory_space<vmem>>, vector<1x1x64x16xf32>
    %85 = vector.shape_cast %84 : vector<1x1x64x16xf32> to vector<64x16xf32>
    %86 = vector.shape_cast %83 : vector<64x16xf32> to vector<1x1x64x16xf32>
    tpu.vector_store %arg4[%c0_87, %c5_88, %c0_89, %c0_90], %86 {strides = array<i32>} : memref<1x8x64x16xf32, #tpu.memory_space<vmem>>, vector<1x1x64x16xf32>,
    %87 = vector.extract_strided_slice %62 {offsets = [0, 96], sizes = [64, 16], strides = [1, 1]} : vector<64x128xf32> to vector<64x16xf32>
    %c0_91 = arith.constant 0 : index
    %c6_92 = arith.constant 6 : index
    %c0_93 = arith.constant 0 : index
    %c0_94 = arith.constant 0 : index
    %88 = vector.load %arg4[%c0_91, %c6_92, %c0_93, %c0_94] : memref<1x8x64x16xf32, #tpu.memory_space<vmem>>, vector<1x1x64x16xf32>
    %89 = vector.shape_cast %88 : vector<1x1x64x16xf32> to vector<64x16xf32>
    %90 = vector.shape_cast %87 : vector<64x16xf32> to vector<1x1x64x16xf32>
    tpu.vector_store %arg4[%c0_91, %c6_92, %c0_93, %c0_94], %90 {strides = array<i32>} : memref<1x8x64x16xf32, #tpu.memory_space<vmem>>, vector<1x1x64x16xf32>,
    %91 = vector.extract_strided_slice %62 {offsets = [0, 112], sizes = [64, 16], strides = [1, 1]} : vector<64x128xf32> to vector<64x16xf32>
    %c0_95 = arith.constant 0 : index
    %c7_96 = arith.constant 7 : index
    %c0_97 = arith.constant 0 : index
    %c0_98 = arith.constant 0 : index
    %92 = vector.load %arg4[%c0_95, %c7_96, %c0_97, %c0_98] : memref<1x8x64x16xf32, #tpu.memory_space<vmem>>, vector<1x1x64x16xf32>
    %93 = vector.shape_cast %92 : vector<1x1x64x16xf32> to vector<64x16xf32>
    %94 = vector.shape_cast %91 : vector<64x16xf32> to vector<1x1x64x16xf32>
    tpu.vector_store %arg4[%c0_95, %c7_96, %c0_97, %c0_98], %94 {strides = array<i32>} : memref<1x8x64x16xf32, #tpu.memory_space<vmem>>, vector<1x1x64x16xf32>,
    return
  }
  func.func @transform_0(%arg0: i32, %arg1: i32) -> (i32, i32, i32, i32) {
    %c0_i32 = arith.constant 0 : i32
    %c0_i32_0 = arith.constant 0 : i32
    %c0_i32_1 = arith.constant 0 : i32
    %c0_i32_2 = arith.constant 0 : i32
    return %arg0, %c0_i32, %c0_i32_0, %c0_i32_1 : i32, i32, i32, i32
  }
  func.func @transform_1(%arg0: i32, %arg1: i32) -> (i32, i32, i32, i32) {
    %c0_i32 = arith.constant 0 : i32
    %c0_i32_0 = arith.constant 0 : i32
    %c0_i32_1 = arith.constant 0 : i32
    return %arg0, %arg1, %c0_i32, %c0_i32_0 : i32, i32, i32, i32
  }
  func.func @transform_2(%arg0: i32, %arg1: i32) -> (i32, i32, i32, i32) {
    %c0_i32 = arith.constant 0 : i32
    %c0_i32_0 = arith.constant 0 : i32
    %c0_i32_1 = arith.constant 0 : i32
    return %arg0, %arg1, %c0_i32, %c0_i32_0 : i32, i32, i32, i32
  }
}

</mosaic_0001>

<llo_original>
// kernel: tpu_custom_call.1
$region0: #{tpu_custom_call.1}
  #allocation0 [shape = 'u32[]', space=smem, size = 0x4, offset = 0x4, fixed_abs, tag = 'smem constant byte address 0x4 - core index']
  #allocation1 [shape = 'u32[144,128]{1,0:T(1,128)}', space=vmem, size = 0x12000, scoped, tag = 'internal scratch']
  #allocation2 [shape = 'f32[64,32]{1,0:T(8,128)}', space=vmem, size = 0x8000, scoped, tag = 'scratch operand']
  #allocation3 [shape = 'f32[32,128]{1,0:T(8,128)}', space=vmem, size = 0x4000, scoped, tag = 'scratch operand']
  %s0 = inlined_call_operand.vmem [shape: f32[2,4,32,16], index: 0, kind: input, shape index: {}]
  %s1 = inlined_call_operand.vmem [shape: f32[2,8,32,16], index: 1, kind: input, shape index: {}]
  %s2 = inlined_call_operand.vmem [shape: f32[2,8,64,16], index: 2, kind: output, shape index: {}]
  %s3 = sld [smem:[#allocation0]]
  $region41: #{tpu_custom_call.1} parent=0
    _
  %s5 = ssub.s32 1, %s3
  %s6 = scalar_select 0, %s5, %s3
  loop: start=0, step=1, limit=4
  $region2: #{tpu_custom_call.1} parent=0 // loop_pre_header
    _
  $region3: #{tpu_custom_call.1} parent=0 // loop_header
    %s8 = sphi 0, %s12
    %p9 = scmp.ge.s32.totalorder %s8, 4
    %s15 = sphi 0, %s27
    %s16 = sphi 0, %s23
    %s17 = sphi 0, %s15
    %s18 = sphi 0, %s16
    %s19 = sphi 0, %s17
    %s20 = sphi 0, %s18
    %s30 = sphi 0, %s32
    %s33 = sphi 0, %s30
    %s34 = sphi 0, %s33
    %s50 = sphi 0, %s34
    %s58 = sphi 0, %s60
    %s61 = sphi 0, %s58
    %s62 = sphi 0, %s61
    %s78 = sphi 0, %s62
    %s86 = sphi 0, %s88
    %s89 = sphi 0, %s86
    %s90 = sphi 0, %s89
    %s106 = sphi 0, %s90
  $region4: #{tpu_custom_call.1} parent=0 // loop_header_branch
    %11 = sbr.rel (%p9) target = $region8
  $region5: #{tpu_custom_call.1} parent=0 // loop_body
    %s13 = ssub.s32 %s8, 1
    %s14 = ssub.s32 %s8, 2
    %s21 = sadd.s32 1, %s16
    %p22 = scmp.ge.s32.totalorder %s21, 1
    %s23 = scalar_select %p22, 0, %s21
    %s24 = sadd.s32 1, %s15
    %s25 = scalar_select %p22, %s24, %s15
    %p26 = scmp.ge.s32.totalorder %s25, 2
    %s27 = scalar_select %p26, 0, %s25
    %s28 = ssub.s32 %s15, %s27
    %p29 = scmp.eq.s32.totalorder %s28, 0
    %s31 = sadd.s32 %s30, 1
    %s32 = scalar_select %p29, %s30, %s31
    %p35 = pneg %p29
    %p36 = scmp.eq.s32.totalorder %s8, 1
    %p37 = por %p35, %p36
    %p38 = scmp.ne.s32.totalorder %s30, %s33
    %p39 = scmp.eq.s32.totalorder %s8, 0
    %p40 = por %p38, %p39
    %p41 = scmp.ne.s32.totalorder %s30, %s33
    %p42 = scmp.eq.s32.totalorder %s13, 1
    %p43 = por %p41, %p42
    %p44 = scmp.ne.s32.totalorder %s33, %s34
    %p45 = scmp.eq.s32.totalorder %s13, 0
    %p46 = por %p44, %p45
    %p47 = scmp.ne.s32.totalorder %s33, %s34
    %p48 = scmp.eq.s32.totalorder %s14, 1
    %p49 = por %p47, %p48
    %p51 = scmp.ne.s32.totalorder %s34, %s50
    %p52 = scmp.eq.s32.totalorder %s14, 0
    %p53 = por %p51, %p52
    %s54 = ssub.s32 %s15, %s27
    %s55 = ssub.s32 %s16, %s23
    %s56 = sor.u32 %s54, %s55
    %p57 = scmp.eq.s32.totalorder %s56, 0
    %s59 = sadd.s32 %s58, 1
    %s60 = scalar_select %p57, %s58, %s59
    %p63 = pneg %p57
    %p64 = scmp.eq.s32.totalorder %s8, 1
    %p65 = por %p63, %p64
    %p66 = scmp.ne.s32.totalorder %s58, %s61
    %p67 = scmp.eq.s32.totalorder %s8, 0
    %p68 = por %p66, %p67
    %p69 = scmp.ne.s32.totalorder %s58, %s61
    %p70 = scmp.eq.s32.totalorder %s13, 1
    %p71 = por %p69, %p70
    %p72 = scmp.ne.s32.totalorder %s61, %s62
    %p73 = scmp.eq.s32.totalorder %s13, 0
    %p74 = por %p72, %p73
    %p75 = scmp.ne.s32.totalorder %s61, %s62
    %p76 = scmp.eq.s32.totalorder %s14, 1
    %p77 = por %p75, %p76
    %p79 = scmp.ne.s32.totalorder %s62, %s78
    %p80 = scmp.eq.s32.totalorder %s14, 0
    %p81 = por %p79, %p80
    %s82 = ssub.s32 %s15, %s27
    %s83 = ssub.s32 %s16, %s23
    %s84 = sor.u32 %s82, %s83
    %p85 = scmp.eq.s32.totalorder %s84, 0
    %s87 = sadd.s32 %s86, 1
    %s88 = scalar_select %p85, %s86, %s87
    %p91 = pneg %p85
    %p92 = scmp.eq.s32.totalorder %s8, 1
    %p93 = por %p91, %p92
    %p94 = scmp.ne.s32.totalorder %s86, %s89
    %p95 = scmp.eq.s32.totalorder %s8, 0
    %p96 = por %p94, %p95
    %p97 = scmp.ne.s32.totalorder %s86, %s89
    %p98 = scmp.eq.s32.totalorder %s13, 1
    %p99 = por %p97, %p98
    %p100 = scmp.ne.s32.totalorder %s89, %s90
    %p101 = scmp.eq.s32.totalorder %s13, 0
    %p102 = por %p100, %p101
    %p103 = scmp.ne.s32.totalorder %s89, %s90
    %p104 = scmp.eq.s32.totalorder %s14, 1
    %p105 = por %p103, %p104
    %p107 = scmp.ne.s32.totalorder %s90, %s106
    %p108 = scmp.eq.s32.totalorder %s14, 0
    %p109 = por %p107, %p108
    %p110 = scmp.le.s32.totalorder 1, %s8
    %p111 = scmp.lt.s32.totalorder %s8, 3
    %p112 = pnand %p110, %p111
    %p113 = pneg %p112
    // Predicated region
    $region9: #{tpu_custom_call.1} parent=5 // pred_check
      _
    $region10: #{tpu_custom_call.1} parent=5 // pred_check_branch
      %115 = sbr.rel (%p112) target = $region12
    $region11: #{tpu_custom_call.1} parent=5 // pred_region
      %s116 = ssub.s32 %s8, 1
    $region12: #{tpu_custom_call.1} parent=5 // pred_fallthru
      _
    %p117 = scmp.lt.s32.totalorder %s8, 2
    // Predicated region
    $region13: #{tpu_custom_call.1} parent=5 // pred_check
      %p118 = pneg %p117
    $region14: #{tpu_custom_call.1} parent=5 // pred_check_branch
      %120 = sbr.rel (%p118) target = $region16
    $region15: #{tpu_custom_call.1} parent=5 // pred_region
      // Predicated region
      $region17: #{tpu_custom_call.1} parent=15 // pred_check
        %p121 = pneg %p40
      $region18: #{tpu_custom_call.1} parent=15 // pred_check_branch
        %123 = sbr.rel (%p121) target = $region20
      $region19: #{tpu_custom_call.1} parent=15 // pred_region
        %p124 = scmp.lt.s32.totalorder %s15, 1
        %s125 = scalar_select %p124, %s15, 1
        %s126 = smul.addr %s125, 16
        %s127 = smul.addr %s126, 8
        %s128 = scalar_lea.vmem %s0, %s127
      $region20: #{tpu_custom_call.1} parent=15 // pred_fallthru
        _
      // Predicated region
      $region21: #{tpu_custom_call.1} parent=15 // pred_check
        %p129 = pneg %p68
      $region22: #{tpu_custom_call.1} parent=15 // pred_check_branch
        %131 = sbr.rel (%p129) target = $region24
      $region23: #{tpu_custom_call.1} parent=15 // pred_region
        %s132 = smul.u32 8, %s16
        %p133 = scmp.lt.s32.totalorder %s15, 1
        %s134 = scalar_select %p133, %s15, 1
        %p135 = scmp.lt.s32.totalorder %s132, 7
        %s136 = scalar_select %p135, %s132, 7
        %s137 = smul.addr %s136, 4
        %s138 = smul.addr %s134, 32
        %s139 = sadd.s32 %s137, %s138
        %s140 = smul.addr %s139, 8
        %s141 = scalar_lea.vmem %s1, %s140
        %s142 = smul.u32 8, %s16
      $region24: #{tpu_custom_call.1} parent=15 // pred_fallthru
        _
    $region16: #{tpu_custom_call.1} parent=5 // pred_fallthru
      _
    %p143 = scmp.le.s32.totalorder 1, %s8
    %p144 = scmp.lt.s32.totalorder %s8, 3
    %p145 = pnand %p143, %p144
    %p146 = pneg %p145
    // Predicated region
    $region25: #{tpu_custom_call.1} parent=5 // pred_check
      _
    $region26: #{tpu_custom_call.1} parent=5 // pred_check_branch
      %148 = sbr.rel (%p145) target = $region28
    $region27: #{tpu_custom_call.1} parent=5 // pred_region
      %s149 = ssub.s32 %s8, 1
      %p150 = scmp.lt.s32.totalorder %s17, 1
      %s151 = scalar_select %p150, %s17, 1
      %s152 = smul.addr %s151, 16
      %s153 = smul.addr %s152, 8
      %s154 = scalar_lea.vmem %s0, %s153
      %p155 = pneg %p46
      %p156 = pneg %p43
      %s157 = smul.u32 8, %s18
      %p158 = scmp.lt.s32.totalorder %s17, 1
      %s159 = scalar_select %p158, %s17, 1
      %p160 = scmp.lt.s32.totalorder %s157, 7
      %s161 = scalar_select %p160, %s157, 7
      %s162 = smul.addr %s161, 4
      %s163 = smul.addr %s159, 32
      %s164 = sadd.s32 %s162, %s163
      %s165 = smul.addr %s164, 8
      %s166 = scalar_lea.vmem %s1, %s165
      %p167 = pneg %p74
      %p168 = pneg %p71
      %p169 = pneg %p102
      %p170 = pneg %p99
      %s171 = smul.u32 8, %s18
      %p172 = scmp.lt.s32.totalorder %s17, 1
      %s173 = scalar_select %p172, %s17, 1
      %p174 = scmp.lt.s32.totalorder %s171, 7
      %s175 = scalar_select %p174, %s171, 7
      %s176 = smul.addr %s175, 8
      %s177 = smul.addr %s173, 64
      %s178 = sadd.s32 %s176, %s177
      %s179 = smul.addr %s178, 8
      %s180 = scalar_lea.vmem %s2, %s179
      %p181 = scmp.lt.s32.totalorder %s17, 1
      %s182 = scalar_select %p181, %s17, 1
      %s183 = smul.addr %s182, 16
      %s184 = smul.addr %s183, 8
      %s185 = scalar_lea.vmem %s0, %s184
      %s186 = smul.u32 8, %s18
      %p187 = scmp.lt.s32.totalorder %s17, 1
      %s188 = scalar_select %p187, %s17, 1
      %p189 = scmp.lt.s32.totalorder %s186, 7
      %s190 = scalar_select %p189, %s186, 7
      %s191 = smul.addr %s190, 4
      %s192 = smul.addr %s188, 32
      %s193 = sadd.s32 %s191, %s192
      %s194 = smul.addr %s193, 8
      %s195 = scalar_lea.vmem %s1, %s194
      %s196 = smul.u32 8, %s18
      %s197 = smul.u32 8, %s18
      %p198 = scmp.lt.s32.totalorder %s17, 1
      %s199 = scalar_select %p198, %s17, 1
      %p200 = scmp.lt.s32.totalorder %s197, 7
      %s201 = scalar_select %p200, %s197, 7
      %s202 = smul.addr %s201, 8
      %s203 = smul.addr %s199, 64
      %s204 = sadd.s32 %s202, %s203
      %s205 = smul.addr %s204, 8
      %s206 = scalar_lea.vmem %s2, %s205
      %s207 = smul.u32 8, %s18
      %v208 = vld [vmem:[%s185] sm:$0xff]
      %v209 = vld [vmem:[%s185 + $0x8] sm:$0xff]
      %v210 = vld [vmem:[%s185 + $0x10] sm:$0xff]
      %v211 = vld [vmem:[%s185 + $0x18] sm:$0xff]
      %212 = vxpose.xlu0.b32.start [1/16] %v208, 128
      %213 = vxpose.xlu0.b32.cont [2/16] %v209, 128
      %214 = vxpose.xlu0.b32.cont [3/16] %v210, 128
      %215 = vxpose.xlu0.b32.cont [4/16] %v211, 128
      %216 = vxpose.xlu0.b32.cont [5/16] 0.0, 128
      %217 = vxpose.xlu0.b32.cont [6/16] 0.0, 128
      %218 = vxpose.xlu0.b32.cont [7/16] 0.0, 128
      %219 = vxpose.xlu0.b32.cont [8/16] 0.0, 128
      %220 = vxpose.xlu0.b32.cont [9/16] 0.0, 128
      %221 = vxpose.xlu0.b32.cont [10/16] 0.0, 128
      %222 = vxpose.xlu0.b32.cont [11/16] 0.0, 128
      %223 = vxpose.xlu0.b32.cont [12/16] 0.0, 128
      %224 = vxpose.xlu0.b32.cont [13/16] 0.0, 128
      %225 = vxpose.xlu0.b32.cont [14/16] 0.0, 128
      %226 = vxpose.xlu0.b32.cont [15/16] 0.0, 128
      %227 = vxpose.xlu0.b32.end [16/16] 0.0, 128
      %v228 = vpop.trf.xlu0
      %v229 = vpop.trf.xlu0
      %v230 = vpop.trf.xlu0
      %v231 = vpop.trf.xlu0
      %v232 = vpop.trf.xlu0
      %v233 = vpop.trf.xlu0
      %v234 = vpop.trf.xlu0
      %v235 = vpop.trf.xlu0
      %v236 = vpop.trf.xlu0
      %v237 = vpop.trf.xlu0
      %v238 = vpop.trf.xlu0
      %v239 = vpop.trf.xlu0
      %v240 = vpop.trf.xlu0
      %v241 = vpop.trf.xlu0
      %v242 = vpop.trf.xlu0
      %v243 = vpop.trf.xlu0
      %vm244 = vcmask 261120
      %245 = vst.msk [vmem:[#allocation2] sm:$0xff] %vm244, %v228
      %246 = vst.msk [vmem:[#allocation2 + $0x8] sm:$0xff] %vm244, %v229
      %s247 = scalar_lea.vmem %s185, 32
      %v248 = vld [vmem:[%s247] sm:$0xff]
      %v249 = vld [vmem:[%s247 + $0x8] sm:$0xff]
      %v250 = vld [vmem:[%s247 + $0x10] sm:$0xff]
      %v251 = vld [vmem:[%s247 + $0x18] sm:$0xff]
      %252 = vxpose.xlu0.b32.start [1/16] %v248, 128
      %253 = vxpose.xlu0.b32.cont [2/16] %v249, 128
      %254 = vxpose.xlu0.b32.cont [3/16] %v250, 128
      %255 = vxpose.xlu0.b32.cont [4/16] %v251, 128
      %256 = vxpose.xlu0.b32.cont [5/16] 0.0, 128
      %257 = vxpose.xlu0.b32.cont [6/16] 0.0, 128
      %258 = vxpose.xlu0.b32.cont [7/16] 0.0, 128
      %259 = vxpose.xlu0.b32.cont [8/16] 0.0, 128
      %260 = vxpose.xlu0.b32.cont [9/16] 0.0, 128
      %261 = vxpose.xlu0.b32.cont [10/16] 0.0, 128
      %262 = vxpose.xlu0.b32.cont [11/16] 0.0, 128
      %263 = vxpose.xlu0.b32.cont [12/16] 0.0, 128
      %264 = vxpose.xlu0.b32.cont [13/16] 0.0, 128
      %265 = vxpose.xlu0.b32.cont [14/16] 0.0, 128
      %266 = vxpose.xlu0.b32.cont [15/16] 0.0, 128
      %267 = vxpose.xlu0.b32.end [16/16] 0.0, 128
      %v268 = vpop.trf.xlu0
      %v269 = vpop.trf.xlu0
      %v270 = vpop.trf.xlu0
      %v271 = vpop.trf.xlu0
      %v272 = vpop.trf.xlu0
      %v273 = vpop.trf.xlu0
      %v274 = vpop.trf.xlu0
      %v275 = vpop.trf.xlu0
      %v276 = vpop.trf.xlu0
      %v277 = vpop.trf.xlu0
      %v278 = vpop.trf.xlu0
      %v279 = vpop.trf.xlu0
      %v280 = vpop.trf.xlu0
      %v281 = vpop.trf.xlu0
      %v282 = vpop.trf.xlu0
      %v283 = vpop.trf.xlu0
      %284 = vst.msk [vmem:[#allocation2 + $0x10] sm:$0xff] %vm244, %v268
      %285 = vst.msk [vmem:[#allocation2 + $0x18] sm:$0xff] %vm244, %v269
      %s286 = scalar_lea.vmem %s185, 64
      %v287 = vld [vmem:[%s286] sm:$0xff]
      %v288 = vld [vmem:[%s286 + $0x8] sm:$0xff]
      %v289 = vld [vmem:[%s286 + $0x10] sm:$0xff]
      %v290 = vld [vmem:[%s286 + $0x18] sm:$0xff]
      %291 = vxpose.xlu0.b32.start [1/16] %v287, 128
      %292 = vxpose.xlu0.b32.cont [2/16] %v288, 128
      %293 = vxpose.xlu0.b32.cont [3/16] %v289, 128
      %294 = vxpose.xlu0.b32.cont [4/16] %v290, 128
      %295 = vxpose.xlu0.b32.cont [5/16] 0.0, 128
      %296 = vxpose.xlu0.b32.cont [6/16] 0.0, 128
      %297 = vxpose.xlu0.b32.cont [7/16] 0.0, 128
      %298 = vxpose.xlu0.b32.cont [8/16] 0.0, 128
      %299 = vxpose.xlu0.b32.cont [9/16] 0.0, 128
      %300 = vxpose.xlu0.b32.cont [10/16] 0.0, 128
      %301 = vxpose.xlu0.b32.cont [11/16] 0.0, 128
      %302 = vxpose.xlu0.b32.cont [12/16] 0.0, 128
      %303 = vxpose.xlu0.b32.cont [13/16] 0.0, 128
      %304 = vxpose.xlu0.b32.cont [14/16] 0.0, 128
      %305 = vxpose.xlu0.b32.cont [15/16] 0.0, 128
      %306 = vxpose.xlu0.b32.end [16/16] 0.0, 128
      %v307 = vpop.trf.xlu0
      %v308 = vpop.trf.xlu0
      %v309 = vpop.trf.xlu0
      %v310 = vpop.trf.xlu0
      %v311 = vpop.trf.xlu0
      %v312 = vpop.trf.xlu0
      %v313 = vpop.trf.xlu0
      %v314 = vpop.trf.xlu0
      %v315 = vpop.trf.xlu0
      %v316 = vpop.trf.xlu0
      %v317 = vpop.trf.xlu0
      %v318 = vpop.trf.xlu0
      %v319 = vpop.trf.xlu0
      %v320 = vpop.trf.xlu0
      %v321 = vpop.trf.xlu0
      %v322 = vpop.trf.xlu0
      %323 = vst.msk [vmem:[#allocation2 + $0x20] sm:$0xff] %vm244, %v307
      %324 = vst.msk [vmem:[#allocation2 + $0x28] sm:$0xff] %vm244, %v308
      %s325 = scalar_lea.vmem %s185, 96
      %v326 = vld [vmem:[%s325] sm:$0xff]
      %v327 = vld [vmem:[%s325 + $0x8] sm:$0xff]
      %v328 = vld [vmem:[%s325 + $0x10] sm:$0xff]
      %v329 = vld [vmem:[%s325 + $0x18] sm:$0xff]
      %330 = vxpose.xlu0.b32.start [1/16] %v326, 128
      %331 = vxpose.xlu0.b32.cont [2/16] %v327, 128
      %332 = vxpose.xlu0.b32.cont [3/16] %v328, 128
      %333 = vxpose.xlu0.b32.cont [4/16] %v329, 128
      %334 = vxpose.xlu0.b32.cont [5/16] 0.0, 128
      %335 = vxpose.xlu0.b32.cont [6/16] 0.0, 128
      %336 = vxpose.xlu0.b32.cont [7/16] 0.0, 128
      %337 = vxpose.xlu0.b32.cont [8/16] 0.0, 128
      %338 = vxpose.xlu0.b32.cont [9/16] 0.0, 128
      %339 = vxpose.xlu0.b32.cont [10/16] 0.0, 128
      %340 = vxpose.xlu0.b32.cont [11/16] 0.0, 128
      %341 = vxpose.xlu0.b32.cont [12/16] 0.0, 128
      %342 = vxpose.xlu0.b32.cont [13/16] 0.0, 128
      %343 = vxpose.xlu0.b32.cont [14/16] 0.0, 128
      %344 = vxpose.xlu0.b32.cont [15/16] 0.0, 128
      %345 = vxpose.xlu0.b32.end [16/16] 0.0, 128
      %v346 = vpop.trf.xlu0
      %v347 = vpop.trf.xlu0
      %v348 = vpop.trf.xlu0
      %v349 = vpop.trf.xlu0
      %v350 = vpop.trf.xlu0
      %v351 = vpop.trf.xlu0
      %v352 = vpop.trf.xlu0
      %v353 = vpop.trf.xlu0
      %v354 = vpop.trf.xlu0
      %v355 = vpop.trf.xlu0
      %v356 = vpop.trf.xlu0
      %v357 = vpop.trf.xlu0
      %v358 = vpop.trf.xlu0
      %v359 = vpop.trf.xlu0
      %v360 = vpop.trf.xlu0
      %v361 = vpop.trf.xlu0
      %362 = vst.msk [vmem:[#allocation2 + $0x30] sm:$0xff] %vm244, %v346
      %363 = vst.msk [vmem:[#allocation2 + $0x38] sm:$0xff] %vm244, %v347
      %v364 = vld [vmem:[%s195] sm:$0xff]
      %v365 = vld [vmem:[%s195 + $0x8] sm:$0xff]
      %v366 = vld [vmem:[%s195 + $0x10] sm:$0xff]
      %v367 = vld [vmem:[%s195 + $0x18] sm:$0xff]
      %vm368 = vcmask 130048
      %369 = vst.msk [vmem:[#allocation3] sm:$0xff] %vm368, %v364
      %370 = vst.msk [vmem:[#allocation3 + $0x8] sm:$0xff] %vm368, %v365
      %371 = vst.msk [vmem:[#allocation3 + $0x10] sm:$0xff] %vm368, %v366
      %372 = vst.msk [vmem:[#allocation3 + $0x18] sm:$0xff] %vm368, %v367
      %s373 = scalar_lea.vmem %s195, 32
      %v374 = vld [vmem:[%s373] sm:$0xff]
      %v375 = vld [vmem:[%s373 + $0x8] sm:$0xff]
      %v376 = vld [vmem:[%s373 + $0x10] sm:$0xff]
      %v377 = vld [vmem:[%s373 + $0x18] sm:$0xff]
      %382 = vrot.lane.b32.xlu0 %v374, 16
      %v383 = vpop.permute.xlu0 %382
      %384 = vrot.lane.b32.xlu0 %v375, 16
      %v385 = vpop.permute.xlu0 %384
      %386 = vrot.lane.b32.xlu0 %v376, 16
      %v387 = vpop.permute.xlu0 %386
      %388 = vrot.lane.b32.xlu0 %v377, 16
      %v389 = vpop.permute.xlu0 %388
      %vm394 = vcmask 261248
      %395 = vst.msk [vmem:[#allocation3] sm:$0xff] %vm394, %v383
      %396 = vst.msk [vmem:[#allocation3 + $0x8] sm:$0xff] %vm394, %v385
      %397 = vst.msk [vmem:[#allocation3 + $0x10] sm:$0xff] %vm394, %v387
      %398 = vst.msk [vmem:[#allocation3 + $0x18] sm:$0xff] %vm394, %v389
      %s399 = scalar_lea.vmem %s195, 64
      %v400 = vld [vmem:[%s399] sm:$0xff]
      %v401 = vld [vmem:[%s399 + $0x8] sm:$0xff]
      %v402 = vld [vmem:[%s399 + $0x10] sm:$0xff]
      %v403 = vld [vmem:[%s399 + $0x18] sm:$0xff]
      %408 = vrot.lane.b32.xlu0 %v400, 32
      %v409 = vpop.permute.xlu0 %408
      %410 = vrot.lane.b32.xlu0 %v401, 32
      %v411 = vpop.permute.xlu0 %410
      %412 = vrot.lane.b32.xlu0 %v402, 32
      %v413 = vpop.permute.xlu0 %412
      %414 = vrot.lane.b32.xlu0 %v403, 32
      %v415 = vpop.permute.xlu0 %414
      %vm420 = vcmask 392448
      %421 = vst.msk [vmem:[#allocation3] sm:$0xff] %vm420, %v409
      %422 = vst.msk [vmem:[#allocation3 + $0x8] sm:$0xff] %vm420, %v411
      %423 = vst.msk [vmem:[#allocation3 + $0x10] sm:$0xff] %vm420, %v413
      %424 = vst.msk [vmem:[#allocation3 + $0x18] sm:$0xff] %vm420, %v415
      %s425 = scalar_lea.vmem %s195, 96
      %v426 = vld [vmem:[%s425] sm:$0xff]
      %v427 = vld [vmem:[%s425 + $0x8] sm:$0xff]
      %v428 = vld [vmem:[%s425 + $0x10] sm:$0xff]
      %v429 = vld [vmem:[%s425 + $0x18] sm:$0xff]
      %434 = vrot.lane.b32.xlu0 %v426, 48
      %v435 = vpop.permute.xlu0 %434
      %436 = vrot.lane.b32.xlu0 %v427, 48
      %v437 = vpop.permute.xlu0 %436
      %438 = vrot.lane.b32.xlu0 %v428, 48
      %v439 = vpop.permute.xlu0 %438
      %440 = vrot.lane.b32.xlu0 %v429, 48
      %v441 = vpop.permute.xlu0 %440
      %vm446 = vcmask 523648
      %447 = vst.msk [vmem:[#allocation3] sm:$0xff] %vm446, %v435
      %448 = vst.msk [vmem:[#allocation3 + $0x8] sm:$0xff] %vm446, %v437
      %449 = vst.msk [vmem:[#allocation3 + $0x10] sm:$0xff] %vm446, %v439
      %450 = vst.msk [vmem:[#allocation3 + $0x18] sm:$0xff] %vm446, %v441
      %s451 = scalar_lea.vmem %s195, 128
      %v452 = vld [vmem:[%s451] sm:$0xff]
      %v453 = vld [vmem:[%s451 + $0x8] sm:$0xff]
      %v454 = vld [vmem:[%s451 + $0x10] sm:$0xff]
      %v455 = vld [vmem:[%s451 + $0x18] sm:$0xff]
      %460 = vrot.lane.b32.xlu0 %v452, 64
      %v461 = vpop.permute.xlu0 %460
      %462 = vrot.lane.b32.xlu0 %v453, 64
      %v463 = vpop.permute.xlu0 %462
      %464 = vrot.lane.b32.xlu0 %v454, 64
      %v465 = vpop.permute.xlu0 %464
      %466 = vrot.lane.b32.xlu0 %v455, 64
      %v467 = vpop.permute.xlu0 %466
      %vm472 = vcmask 654848
      %473 = vst.msk [vmem:[#allocation3] sm:$0xff] %vm472, %v461
      %474 = vst.msk [vmem:[#allocation3 + $0x8] sm:$0xff] %vm472, %v463
      %475 = vst.msk [vmem:[#allocation3 + $0x10] sm:$0xff] %vm472, %v465
      %476 = vst.msk [vmem:[#allocation3 + $0x18] sm:$0xff] %vm472, %v467
      %s477 = scalar_lea.vmem %s195, 160
      %v478 = vld [vmem:[%s477] sm:$0xff]
      %v479 = vld [vmem:[%s477 + $0x8] sm:$0xff]
      %v480 = vld [vmem:[%s477 + $0x10] sm:$0xff]
      %v481 = vld [vmem:[%s477 + $0x18] sm:$0xff]
      %486 = vrot.lane.b32.xlu0 %v478, 80
      %v487 = vpop.permute.xlu0 %486
      %488 = vrot.lane.b32.xlu0 %v479, 80
      %v489 = vpop.permute.xlu0 %488
      %490 = vrot.lane.b32.xlu0 %v480, 80
      %v491 = vpop.permute.xlu0 %490
      %492 = vrot.lane.b32.xlu0 %v481, 80
      %v493 = vpop.permute.xlu0 %492
      %vm498 = vcmask 786048
      %499 = vst.msk [vmem:[#allocation3] sm:$0xff] %vm498, %v487
      %500 = vst.msk [vmem:[#allocation3 + $0x8] sm:$0xff] %vm498, %v489
      %501 = vst.msk [vmem:[#allocation3 + $0x10] sm:$0xff] %vm498, %v491
      %502 = vst.msk [vmem:[#allocation3 + $0x18] sm:$0xff] %vm498, %v493
      %s503 = scalar_lea.vmem %s195, 192
      %v504 = vld [vmem:[%s503] sm:$0xff]
      %v505 = vld [vmem:[%s503 + $0x8] sm:$0xff]
      %v506 = vld [vmem:[%s503 + $0x10] sm:$0xff]
      %v507 = vld [vmem:[%s503 + $0x18] sm:$0xff]
      %512 = vrot.lane.b32.xlu0 %v504, 96
      %v513 = vpop.permute.xlu0 %512
      %514 = vrot.lane.b32.xlu0 %v505, 96
      %v515 = vpop.permute.xlu0 %514
      %516 = vrot.lane.b32.xlu0 %v506, 96
      %v517 = vpop.permute.xlu0 %516
      %518 = vrot.lane.b32.xlu0 %v507, 96
      %v519 = vpop.permute.xlu0 %518
      %vm524 = vcmask 917248
      %525 = vst.msk [vmem:[#allocation3] sm:$0xff] %vm524, %v513
      %526 = vst.msk [vmem:[#allocation3 + $0x8] sm:$0xff] %vm524, %v515
      %527 = vst.msk [vmem:[#allocation3 + $0x10] sm:$0xff] %vm524, %v517
      %528 = vst.msk [vmem:[#allocation3 + $0x18] sm:$0xff] %vm524, %v519
      %s529 = scalar_lea.vmem %s195, 224
      %v530 = vld [vmem:[%s529] sm:$0xff]
      %v531 = vld [vmem:[%s529 + $0x8] sm:$0xff]
      %v532 = vld [vmem:[%s529 + $0x10] sm:$0xff]
      %v533 = vld [vmem:[%s529 + $0x18] sm:$0xff]
      %538 = vrot.lane.b32.xlu0 %v530, 112
      %v539 = vpop.permute.xlu0 %538
      %540 = vrot.lane.b32.xlu0 %v531, 112
      %v541 = vpop.permute.xlu0 %540
      %542 = vrot.lane.b32.xlu0 %v532, 112
      %v543 = vpop.permute.xlu0 %542
      %544 = vrot.lane.b32.xlu0 %v533, 112
      %v545 = vpop.permute.xlu0 %544
      %vm550 = vcmask 1048448
      %551 = vst.msk [vmem:[#allocation3] sm:$0xff] %vm550, %v539
      %552 = vst.msk [vmem:[#allocation3 + $0x8] sm:$0xff] %vm550, %v541
      %553 = vst.msk [vmem:[#allocation3 + $0x10] sm:$0xff] %vm550, %v543
      %554 = vst.msk [vmem:[#allocation3 + $0x18] sm:$0xff] %vm550, %v545
      %v555 = vld [vmem:[#allocation2] sm:$0xff]
      %v556 = vld [vmem:[#allocation2 + $0x8] sm:$0xff]
      %v557 = vld [vmem:[#allocation2 + $0x10] sm:$0xff]
      %v558 = vld [vmem:[#allocation2 + $0x18] sm:$0xff]
      %v559 = vld [vmem:[#allocation2 + $0x20] sm:$0xff]
      %v560 = vld [vmem:[#allocation2 + $0x28] sm:$0xff]
      %v561 = vld [vmem:[#allocation2 + $0x30] sm:$0xff]
      %v562 = vld [vmem:[#allocation2 + $0x38] sm:$0xff]
      %v563 = vld [vmem:[#allocation3] sm:$0xff]
      %v564 = vld [vmem:[#allocation3 + $0x8] sm:$0xff]
      %v565 = vld [vmem:[#allocation3 + $0x10] sm:$0xff]
      %v566 = vld [vmem:[#allocation3 + $0x18] sm:$0xff]
      %v568 = vsel %vm244, %v555, 0
      %v571 = vsel %vm244, %v556, 0
      %v574 = vsel %vm244, %v557, 0
      %v577 = vsel %vm244, %v558, 0
      %v580 = vsel %vm244, %v559, 0
      %v583 = vsel %vm244, %v560, 0
      %v586 = vsel %vm244, %v561, 0
      %v589 = vsel %vm244, %v562, 0
      %591 = vmatprep.subr.mxu0 0.0
      %592 = vmatpush1.msra.mxu0 0.0
      %593 = vmatprep.subr.mxu0 0.0
      %594 = vmatpush1.msra.mxu0 0.0
      %595 = vmatprep.subr.mxu0 0.0
      %596 = vmatpush1.msra.mxu0 0.0
      %597 = vmatprep.subr.mxu0 0.0
      %598 = vmatpush1.msra.mxu0 0.0
      %599 = vmatprep.subr.mxu0 0.0
      %600 = vmatpush1.msra.mxu0 0.0
      %601 = vmatprep.subr.mxu0 0.0
      %602 = vmatpush1.msra.mxu0 0.0
      %603 = vmatprep.subr.mxu0 0.0
      %604 = vmatpush1.msra.mxu0 0.0
      %605 = vmatprep.subr.mxu0 0.0
      %606 = vmatpush1.msra.mxu0 0.0
      %607 = vmatprep.subr.mxu0 0.0
      %608 = vmatpush1.msra.mxu0 0.0
      %609 = vmatprep.subr.mxu0 0.0
      %610 = vmatpush1.msra.mxu0 0.0
      %611 = vmatprep.subr.mxu0 0.0
      %612 = vmatpush1.msra.mxu0 0.0
      %613 = vmatprep.subr.mxu0 0.0
      %614 = vmatpush1.msra.mxu0 0.0
      %615 = vmatprep.subr.mxu0 0.0
      %616 = vmatpush1.msra.mxu0 %v566
      %617 = vmatprep.subr.mxu0 0.0
      %618 = vmatpush1.msra.mxu0 %v565
      %619 = vmatprep.subr.mxu0 0.0
      %620 = vmatpush1.msra.mxu0 %v564
      %621 = vmatprep.subr.mxu0 0.0
      %622 = vmatpush1.msra.mxu0 %v563
      %623 = vmatprep.subr.mxu0 0.0
      %624 = vmatpush2.msra.mxu0 0.0
      %625 = vmatprep.subr.mxu0 0.0
      %626 = vmatpush2.msra.mxu0 0.0
      %627 = vmatprep.subr.mxu0 0.0
      %628 = vmatpush2.msra.mxu0 0.0
      %629 = vmatprep.subr.mxu0 0.0
      %630 = vmatpush2.msra.mxu0 0.0
      %631 = vmatprep.subr.mxu0 0.0
      %632 = vmatpush2.msra.mxu0 0.0
      %633 = vmatprep.subr.mxu0 0.0
      %634 = vmatpush2.msra.mxu0 0.0
      %635 = vmatprep.subr.mxu0 0.0
      %636 = vmatpush2.msra.mxu0 0.0
      %637 = vmatprep.subr.mxu0 0.0
      %638 = vmatpush2.msra.mxu0 0.0
      %639 = vmatprep.subr.mxu0 0.0
      %640 = vmatpush2.msra.mxu0 0.0
      %641 = vmatprep.subr.mxu0 0.0
      %642 = vmatpush2.msra.mxu0 0.0
      %643 = vmatprep.subr.mxu0 0.0
      %644 = vmatpush2.msra.mxu0 0.0
      %645 = vmatprep.subr.mxu0 0.0
      %646 = vmatpush2.msra.mxu0 0.0
      %647 = vmatprep.subr.mxu0 0.0
      %648 = vmatpush2.msra.mxu0 0.0
      %649 = vmatprep.subr.mxu0 0.0
      %650 = vmatpush2.msra.mxu0 0.0
      %651 = vmatprep.subr.mxu0 0.0
      %652 = vmatpush2.msra.mxu0 0.0
      %653 = vmatprep.subr.mxu0 0.0
      %654 = vmatpush2.msra.mxu0 0.0
      %655 = vmatprep.mubr.f32.mxu0 0.0
      %656 = vmatmul.mubr.f32.gmra.mxu0 %v568
      %v657 = vpop.f32.mrf.mxu0
      %v658 = vadd.f32 0.0, %v657
      %v659 = vpop.f32.mrf.mxu0
      %660 = vmatprep.mubr.f32.mxu0 0.0
      %661 = vmatmul.mubr.f32.gmra.mxu0 %v571
      %v662 = vpop.f32.mrf.mxu0
      %v663 = vadd.f32 0.0, %v662
      %v664 = vpop.f32.mrf.mxu0
      %665 = vmatprep.mubr.f32.mxu0 0.0
      %666 = vmatmul.mubr.f32.gmra.mxu0 %v574
      %v667 = vpop.f32.mrf.mxu0
      %v668 = vadd.f32 0.0, %v667
      %v669 = vpop.f32.mrf.mxu0
      %670 = vmatprep.mubr.f32.mxu0 0.0
      %671 = vmatmul.mubr.f32.gmra.mxu0 %v577
      %v672 = vpop.f32.mrf.mxu0
      %v673 = vadd.f32 0.0, %v672
      %v674 = vpop.f32.mrf.mxu0
      %675 = vmatprep.mubr.f32.mxu0 0.0
      %676 = vmatmul.mubr.f32.gmra.mxu0 %v580
      %v677 = vpop.f32.mrf.mxu0
      %v678 = vadd.f32 0.0, %v677
      %v679 = vpop.f32.mrf.mxu0
      %680 = vmatprep.mubr.f32.mxu0 0.0
      %681 = vmatmul.mubr.f32.gmra.mxu0 %v583
      %v682 = vpop.f32.mrf.mxu0
      %v683 = vadd.f32 0.0, %v682
      %v684 = vpop.f32.mrf.mxu0
      %685 = vmatprep.mubr.f32.mxu0 0.0
      %686 = vmatmul.mubr.f32.gmra.mxu0 %v586
      %v687 = vpop.f32.mrf.mxu0
      %v688 = vadd.f32 0.0, %v687
      %v689 = vpop.f32.mrf.mxu0
      %690 = vmatprep.mubr.f32.mxu0 0.0
      %691 = vmatmul.mubr.f32.gmra.mxu0 %v589
      %v692 = vpop.f32.mrf.mxu0
      %v693 = vadd.f32 0.0, %v692
      %v694 = vpop.f32.mrf.mxu0
      %695 = vdwg.mxu0
      %v696 = vmul.f32 %v555, %v555
      %v697 = vmul.f32 %v556, %v556
      %v698 = vmul.f32 %v557, %v557
      %v699 = vmul.f32 %v558, %v558
      %v700 = vmul.f32 %v559, %v559
      %v701 = vmul.f32 %v560, %v560
      %v702 = vmul.f32 %v561, %v561
      %v703 = vmul.f32 %v562, %v562
      %v704 = vsel %vm244, %v696, 0.0
      %705 = vadd.xlane.f32.xlu0 %v704
      %v706 = vpop.xlane.xlu0 %705
      %v707 = vsel %vm244, %v697, 0.0
      %708 = vadd.xlane.f32.xlu0 %v707
      %v709 = vpop.xlane.xlu0 %708
      %v710 = vsel %vm244, %v698, 0.0
      %711 = vadd.xlane.f32.xlu0 %v710
      %v712 = vpop.xlane.xlu0 %711
      %v713 = vsel %vm244, %v699, 0.0
      %714 = vadd.xlane.f32.xlu0 %v713
      %v715 = vpop.xlane.xlu0 %714
      %v716 = vsel %vm244, %v700, 0.0
      %717 = vadd.xlane.f32.xlu0 %v716
      %v718 = vpop.xlane.xlu0 %717
      %v719 = vsel %vm244, %v701, 0.0
      %720 = vadd.xlane.f32.xlu0 %v719
      %v721 = vpop.xlane.xlu0 %720
      %v722 = vsel %vm244, %v702, 0.0
      %723 = vadd.xlane.f32.xlu0 %v722
      %v724 = vpop.xlane.xlu0 %723
      %v725 = vsel %vm244, %v703, 0.0
      %726 = vadd.xlane.f32.xlu0 %v725
      %v727 = vpop.xlane.xlu0 %726
      %v728 = vmul.f32 %v563, %v563
      %v729 = vmul.f32 %v564, %v564
      %v730 = vmul.f32 %v565, %v565
      %v731 = vmul.f32 %v566, %v566
      %v732 = vadd.f32 %v728, %v729
      %v733 = vadd.f32 %v732, %v730
      %v734 = vadd.f32 %v733, %v731
      %v735 = vrot.slane %v734, 4
      %v736 = vadd.f32 %v734, %v735
      %v737 = vrot.slane %v736, 2
      %v738 = vadd.f32 %v736, %v737
      %v739 = vrot.slane %v738, 1
      %v740 = vadd.f32 %v738, %v739
      %v741 = vrsqrt.pop %v706
      %v742 = vmul.f32 %v706, %v741
      %vm743 = vcmp.eq.f32.partialorder %v706, inf
      %v744 = vsel %vm743, %v706, %v742
      %vm745 = vcmp.eq.f32.partialorder %v706, 0.0
      %v746 = vand.u32 %v706, 2147483648
      %v747 = vsel %vm745, %v746, %v744
      %v748 = vrsqrt.pop %v709
      %v749 = vmul.f32 %v709, %v748
      %vm750 = vcmp.eq.f32.partialorder %v709, inf
      %v751 = vsel %vm750, %v709, %v749
      %vm752 = vcmp.eq.f32.partialorder %v709, 0.0
      %v753 = vand.u32 %v709, 2147483648
      %v754 = vsel %vm752, %v753, %v751
      %v755 = vrsqrt.pop %v712
      %v756 = vmul.f32 %v712, %v755
      %vm757 = vcmp.eq.f32.partialorder %v712, inf
      %v758 = vsel %vm757, %v712, %v756
      %vm759 = vcmp.eq.f32.partialorder %v712, 0.0
      %v760 = vand.u32 %v712, 2147483648
      %v761 = vsel %vm759, %v760, %v758
      %v762 = vrsqrt.pop %v715
      %v763 = vmul.f32 %v715, %v762
      %vm764 = vcmp.eq.f32.partialorder %v715, inf
      %v765 = vsel %vm764, %v715, %v763
      %vm766 = vcmp.eq.f32.partialorder %v715, 0.0
      %v767 = vand.u32 %v715, 2147483648
      %v768 = vsel %vm766, %v767, %v765
      %v769 = vrsqrt.pop %v718
      %v770 = vmul.f32 %v718, %v769
      %vm771 = vcmp.eq.f32.partialorder %v718, inf
      %v772 = vsel %vm771, %v718, %v770
      %vm773 = vcmp.eq.f32.partialorder %v718, 0.0
      %v774 = vand.u32 %v718, 2147483648
      %v775 = vsel %vm773, %v774, %v772
      %v776 = vrsqrt.pop %v721
      %v777 = vmul.f32 %v721, %v776
      %vm778 = vcmp.eq.f32.partialorder %v721, inf
      %v779 = vsel %vm778, %v721, %v777
      %vm780 = vcmp.eq.f32.partialorder %v721, 0.0
      %v781 = vand.u32 %v721, 2147483648
      %v782 = vsel %vm780, %v781, %v779
      %v783 = vrsqrt.pop %v724
      %v784 = vmul.f32 %v724, %v783
      %vm785 = vcmp.eq.f32.partialorder %v724, inf
      %v786 = vsel %vm785, %v724, %v784
      %vm787 = vcmp.eq.f32.partialorder %v724, 0.0
      %v788 = vand.u32 %v724, 2147483648
      %v789 = vsel %vm787, %v788, %v786
      %v790 = vrsqrt.pop %v727
      %v791 = vmul.f32 %v727, %v790
      %vm792 = vcmp.eq.f32.partialorder %v727, inf
      %v793 = vsel %vm792, %v727, %v791
      %vm794 = vcmp.eq.f32.partialorder %v727, 0.0
      %v795 = vand.u32 %v727, 2147483648
      %v796 = vsel %vm794, %v795, %v793
      %v797 = vadd.f32 %v747, 1e-08
      %v798 = vadd.f32 %v754, 1e-08
      %v799 = vadd.f32 %v761, 1e-08
      %v800 = vadd.f32 %v768, 1e-08
      %v801 = vadd.f32 %v775, 1e-08
      %v802 = vadd.f32 %v782, 1e-08
      %v803 = vadd.f32 %v789, 1e-08
      %v804 = vadd.f32 %v796, 1e-08
      %v805 = vrcp.pop %v797
      %v806 = vmul.f32 1.0, %v805
      %v807 = vrcp.pop %v798
      %v808 = vmul.f32 1.0, %v807
      %v809 = vrcp.pop %v799
      %v810 = vmul.f32 1.0, %v809
      %v811 = vrcp.pop %v800
      %v812 = vmul.f32 1.0, %v811
      %v813 = vrcp.pop %v801
      %v814 = vmul.f32 1.0, %v813
      %v815 = vrcp.pop %v802
      %v816 = vmul.f32 1.0, %v815
      %v817 = vrcp.pop %v803
      %v818 = vmul.f32 1.0, %v817
      %v819 = vrcp.pop %v804
      %v820 = vmul.f32 1.0, %v819
      %v821 = vrsqrt.pop %v740
      %v822 = vmul.f32 %v740, %v821
      %vm823 = vcmp.eq.f32.partialorder %v740, inf
      %v824 = vsel %vm823, %v740, %v822
      %vm825 = vcmp.eq.f32.partialorder %v740, 0.0
      %v826 = vand.u32 %v740, 2147483648
      %v827 = vsel %vm825, %v826, %v824
      %v828 = vadd.f32 %v827, 1e-08
      %v829 = vrcp.pop %v828
      %v830 = vmul.f32 1.0, %v829
      %v831 = vmul.f32 %v658, %v806
      %v832 = vmul.f32 %v663, %v808
      %v833 = vmul.f32 %v668, %v810
      %v834 = vmul.f32 %v673, %v812
      %v835 = vmul.f32 %v678, %v814
      %v836 = vmul.f32 %v683, %v816
      %v837 = vmul.f32 %v688, %v818
      %v838 = vmul.f32 %v693, %v820
      %v839 = vmul.f32 %v831, %v830
      %v840 = vmul.f32 %v832, %v830
      %v841 = vmul.f32 %v833, %v830
      %v842 = vmul.f32 %v834, %v830
      %v843 = vmul.f32 %v835, %v830
      %v844 = vmul.f32 %v836, %v830
      %v845 = vmul.f32 %v837, %v830
      %v846 = vmul.f32 %v838, %v830
      %847 = vst.msk [vmem:[%s206] sm:$0xff] %vm368, %v839
      %848 = vst.msk [vmem:[%s206 + $0x8] sm:$0xff] %vm368, %v840
      %849 = vst.msk [vmem:[%s206 + $0x10] sm:$0xff] %vm368, %v841
      %850 = vst.msk [vmem:[%s206 + $0x18] sm:$0xff] %vm368, %v842
      %851 = vst.msk [vmem:[%s206 + $0x20] sm:$0xff] %vm368, %v843
      %852 = vst.msk [vmem:[%s206 + $0x28] sm:$0xff] %vm368, %v844
      %853 = vst.msk [vmem:[%s206 + $0x30] sm:$0xff] %vm368, %v845
      %854 = vst.msk [vmem:[%s206 + $0x38] sm:$0xff] %vm368, %v846
      %863 = vrot.lane.b32.xlu0 %v839, 112
      %v864 = vpop.permute.xlu0 %863
      %865 = vrot.lane.b32.xlu0 %v840, 112
      %v866 = vpop.permute.xlu0 %865
      %867 = vrot.lane.b32.xlu0 %v841, 112
      %v868 = vpop.permute.xlu0 %867
      %869 = vrot.lane.b32.xlu0 %v842, 112
      %v870 = vpop.permute.xlu0 %869
      %871 = vrot.lane.b32.xlu0 %v843, 112
      %v872 = vpop.permute.xlu0 %871
      %873 = vrot.lane.b32.xlu0 %v844, 112
      %v874 = vpop.permute.xlu0 %873
      %875 = vrot.lane.b32.xlu0 %v845, 112
      %v876 = vpop.permute.xlu0 %875
      %877 = vrot.lane.b32.xlu0 %v846, 112
      %v878 = vpop.permute.xlu0 %877
      %s887 = scalar_lea.vmem %s206, 64
      %888 = vst.msk [vmem:[%s887] sm:$0xff] %vm368, %v864
      %889 = vst.msk [vmem:[%s887 + $0x8] sm:$0xff] %vm368, %v866
      %890 = vst.msk [vmem:[%s887 + $0x10] sm:$0xff] %vm368, %v868
      %891 = vst.msk [vmem:[%s887 + $0x18] sm:$0xff] %vm368, %v870
      %892 = vst.msk [vmem:[%s887 + $0x20] sm:$0xff] %vm368, %v872
      %893 = vst.msk [vmem:[%s887 + $0x28] sm:$0xff] %vm368, %v874
      %894 = vst.msk [vmem:[%s887 + $0x30] sm:$0xff] %vm368, %v876
      %895 = vst.msk [vmem:[%s887 + $0x38] sm:$0xff] %vm368, %v878
      %896 = vrot.lane.b32.xlu0 %v839, 96
      %v897 = vpop.permute.xlu0 %896
      %898 = vrot.lane.b32.xlu0 %v840, 96
      %v899 = vpop.permute.xlu0 %898
      %900 = vrot.lane.b32.xlu0 %v841, 96
      %v901 = vpop.permute.xlu0 %900
      %902 = vrot.lane.b32.xlu0 %v842, 96
      %v903 = vpop.permute.xlu0 %902
      %904 = vrot.lane.b32.xlu0 %v843, 96
      %v905 = vpop.permute.xlu0 %904
      %906 = vrot.lane.b32.xlu0 %v844, 96
      %v907 = vpop.permute.xlu0 %906
      %908 = vrot.lane.b32.xlu0 %v845, 96
      %v909 = vpop.permute.xlu0 %908
      %910 = vrot.lane.b32.xlu0 %v846, 96
      %v911 = vpop.permute.xlu0 %910
      %s920 = scalar_lea.vmem %s206, 128
      %921 = vst.msk [vmem:[%s920] sm:$0xff] %vm368, %v897
      %922 = vst.msk [vmem:[%s920 + $0x8] sm:$0xff] %vm368, %v899
      %923 = vst.msk [vmem:[%s920 + $0x10] sm:$0xff] %vm368, %v901
      %924 = vst.msk [vmem:[%s920 + $0x18] sm:$0xff] %vm368, %v903
      %925 = vst.msk [vmem:[%s920 + $0x20] sm:$0xff] %vm368, %v905
      %926 = vst.msk [vmem:[%s920 + $0x28] sm:$0xff] %vm368, %v907
      %927 = vst.msk [vmem:[%s920 + $0x30] sm:$0xff] %vm368, %v909
      %928 = vst.msk [vmem:[%s920 + $0x38] sm:$0xff] %vm368, %v911
      %929 = vrot.lane.b32.xlu0 %v839, 80
      %v930 = vpop.permute.xlu0 %929
      %931 = vrot.lane.b32.xlu0 %v840, 80
      %v932 = vpop.permute.xlu0 %931
      %933 = vrot.lane.b32.xlu0 %v841, 80
      %v934 = vpop.permute.xlu0 %933
      %935 = vrot.lane.b32.xlu0 %v842, 80
      %v936 = vpop.permute.xlu0 %935
      %937 = vrot.lane.b32.xlu0 %v843, 80
      %v938 = vpop.permute.xlu0 %937
      %939 = vrot.lane.b32.xlu0 %v844, 80
      %v940 = vpop.permute.xlu0 %939
      %941 = vrot.lane.b32.xlu0 %v845, 80
      %v942 = vpop.permute.xlu0 %941
      %943 = vrot.lane.b32.xlu0 %v846, 80
      %v944 = vpop.permute.xlu0 %943
      %s953 = scalar_lea.vmem %s206, 192
      %954 = vst.msk [vmem:[%s953] sm:$0xff] %vm368, %v930
      %955 = vst.msk [vmem:[%s953 + $0x8] sm:$0xff] %vm368, %v932
      %956 = vst.msk [vmem:[%s953 + $0x10] sm:$0xff] %vm368, %v934
      %957 = vst.msk [vmem:[%s953 + $0x18] sm:$0xff] %vm368, %v936
      %958 = vst.msk [vmem:[%s953 + $0x20] sm:$0xff] %vm368, %v938
      %959 = vst.msk [vmem:[%s953 + $0x28] sm:$0xff] %vm368, %v940
      %960 = vst.msk [vmem:[%s953 + $0x30] sm:$0xff] %vm368, %v942
      %961 = vst.msk [vmem:[%s953 + $0x38] sm:$0xff] %vm368, %v944
      %962 = vrot.lane.b32.xlu0 %v839, 64
      %v963 = vpop.permute.xlu0 %962
      %964 = vrot.lane.b32.xlu0 %v840, 64
      %v965 = vpop.permute.xlu0 %964
      %966 = vrot.lane.b32.xlu0 %v841, 64
      %v967 = vpop.permute.xlu0 %966
      %968 = vrot.lane.b32.xlu0 %v842, 64
      %v969 = vpop.permute.xlu0 %968
      %970 = vrot.lane.b32.xlu0 %v843, 64
      %v971 = vpop.permute.xlu0 %970
      %972 = vrot.lane.b32.xlu0 %v844, 64
      %v973 = vpop.permute.xlu0 %972
      %974 = vrot.lane.b32.xlu0 %v845, 64
      %v975 = vpop.permute.xlu0 %974
      %976 = vrot.lane.b32.xlu0 %v846, 64
      %v977 = vpop.permute.xlu0 %976
      %s986 = scalar_lea.vmem %s206, 256
      %987 = vst.msk [vmem:[%s986] sm:$0xff] %vm368, %v963
      %988 = vst.msk [vmem:[%s986 + $0x8] sm:$0xff] %vm368, %v965
      %989 = vst.msk [vmem:[%s986 + $0x10] sm:$0xff] %vm368, %v967
      %990 = vst.msk [vmem:[%s986 + $0x18] sm:$0xff] %vm368, %v969
      %991 = vst.msk [vmem:[%s986 + $0x20] sm:$0xff] %vm368, %v971
      %992 = vst.msk [vmem:[%s986 + $0x28] sm:$0xff] %vm368, %v973
      %993 = vst.msk [vmem:[%s986 + $0x30] sm:$0xff] %vm368, %v975
      %994 = vst.msk [vmem:[%s986 + $0x38] sm:$0xff] %vm368, %v977
      %995 = vrot.lane.b32.xlu0 %v839, 48
      %v996 = vpop.permute.xlu0 %995
      %997 = vrot.lane.b32.xlu0 %v840, 48
      %v998 = vpop.permute.xlu0 %997
      %999 = vrot.lane.b32.xlu0 %v841, 48
      %v1000 = vpop.permute.xlu0 %999
      %1001 = vrot.lane.b32.xlu0 %v842, 48
      %v1002 = vpop.permute.xlu0 %1001
      %1003 = vrot.lane.b32.xlu0 %v843, 48
      %v1004 = vpop.permute.xlu0 %1003
      %1005 = vrot.lane.b32.xlu0 %v844, 48
      %v1006 = vpop.permute.xlu0 %1005
      %1007 = vrot.lane.b32.xlu0 %v845, 48
      %v1008 = vpop.permute.xlu0 %1007
      %1009 = vrot.lane.b32.xlu0 %v846, 48
      %v1010 = vpop.permute.xlu0 %1009
      %s1019 = scalar_lea.vmem %s206, 320
      %1020 = vst.msk [vmem:[%s1019] sm:$0xff] %vm368, %v996
      %1021 = vst.msk [vmem:[%s1019 + $0x8] sm:$0xff] %vm368, %v998
      %1022 = vst.msk [vmem:[%s1019 + $0x10] sm:$0xff] %vm368, %v1000
      %1023 = vst.msk [vmem:[%s1019 + $0x18] sm:$0xff] %vm368, %v1002
      %1024 = vst.msk [vmem:[%s1019 + $0x20] sm:$0xff] %vm368, %v1004
      %1025 = vst.msk [vmem:[%s1019 + $0x28] sm:$0xff] %vm368, %v1006
      %1026 = vst.msk [vmem:[%s1019 + $0x30] sm:$0xff] %vm368, %v1008
      %1027 = vst.msk [vmem:[%s1019 + $0x38] sm:$0xff] %vm368, %v1010
      %1028 = vrot.lane.b32.xlu0 %v839, 32
      %v1029 = vpop.permute.xlu0 %1028
      %1030 = vrot.lane.b32.xlu0 %v840, 32
      %v1031 = vpop.permute.xlu0 %1030
      %1032 = vrot.lane.b32.xlu0 %v841, 32
      %v1033 = vpop.permute.xlu0 %1032
      %1034 = vrot.lane.b32.xlu0 %v842, 32
      %v1035 = vpop.permute.xlu0 %1034
      %1036 = vrot.lane.b32.xlu0 %v843, 32
      %v1037 = vpop.permute.xlu0 %1036
      %1038 = vrot.lane.b32.xlu0 %v844, 32
      %v1039 = vpop.permute.xlu0 %1038
      %1040 = vrot.lane.b32.xlu0 %v845, 32
      %v1041 = vpop.permute.xlu0 %1040
      %1042 = vrot.lane.b32.xlu0 %v846, 32
      %v1043 = vpop.permute.xlu0 %1042
      %s1052 = scalar_lea.vmem %s206, 384
      %1053 = vst.msk [vmem:[%s1052] sm:$0xff] %vm368, %v1029
      %1054 = vst.msk [vmem:[%s1052 + $0x8] sm:$0xff] %vm368, %v1031
      %1055 = vst.msk [vmem:[%s1052 + $0x10] sm:$0xff] %vm368, %v1033
      %1056 = vst.msk [vmem:[%s1052 + $0x18] sm:$0xff] %vm368, %v1035
      %1057 = vst.msk [vmem:[%s1052 + $0x20] sm:$0xff] %vm368, %v1037
      %1058 = vst.msk [vmem:[%s1052 + $0x28] sm:$0xff] %vm368, %v1039
      %1059 = vst.msk [vmem:[%s1052 + $0x30] sm:$0xff] %vm368, %v1041
      %1060 = vst.msk [vmem:[%s1052 + $0x38] sm:$0xff] %vm368, %v1043
      %1061 = vrot.lane.b32.xlu0 %v839, 16
      %v1062 = vpop.permute.xlu0 %1061
      %1063 = vrot.lane.b32.xlu0 %v840, 16
      %v1064 = vpop.permute.xlu0 %1063
      %1065 = vrot.lane.b32.xlu0 %v841, 16
      %v1066 = vpop.permute.xlu0 %1065
      %1067 = vrot.lane.b32.xlu0 %v842, 16
      %v1068 = vpop.permute.xlu0 %1067
      %1069 = vrot.lane.b32.xlu0 %v843, 16
      %v1070 = vpop.permute.xlu0 %1069
      %1071 = vrot.lane.b32.xlu0 %v844, 16
      %v1072 = vpop.permute.xlu0 %1071
      %1073 = vrot.lane.b32.xlu0 %v845, 16
      %v1074 = vpop.permute.xlu0 %1073
      %1075 = vrot.lane.b32.xlu0 %v846, 16
      %v1076 = vpop.permute.xlu0 %1075
      %s1085 = scalar_lea.vmem %s206, 448
      %1086 = vst.msk [vmem:[%s1085] sm:$0xff] %vm368, %v1062
      %1087 = vst.msk [vmem:[%s1085 + $0x8] sm:$0xff] %vm368, %v1064
      %1088 = vst.msk [vmem:[%s1085 + $0x10] sm:$0xff] %vm368, %v1066
      %1089 = vst.msk [vmem:[%s1085 + $0x18] sm:$0xff] %vm368, %v1068
      %1090 = vst.msk [vmem:[%s1085 + $0x20] sm:$0xff] %vm368, %v1070
      %1091 = vst.msk [vmem:[%s1085 + $0x28] sm:$0xff] %vm368, %v1072
      %1092 = vst.msk [vmem:[%s1085 + $0x30] sm:$0xff] %vm368, %v1074
      %1093 = vst.msk [vmem:[%s1085 + $0x38] sm:$0xff] %vm368, %v1076
      %s1094 = smul.u32 8, %s18
      %p1095 = scmp.lt.s32.totalorder %s17, 1
      %s1096 = scalar_select %p1095, %s17, 1
      %p1097 = scmp.lt.s32.totalorder %s1094, 7
      %s1098 = scalar_select %p1097, %s1094, 7
      %s1099 = smul.addr %s1098, 8
      %s1100 = smul.addr %s1096, 64
      %s1101 = sadd.s32 %s1099, %s1100
      %s1102 = smul.addr %s1101, 8
      %s1103 = scalar_lea.vmem %s2, %s1102
      // Predicated region
      $region29: #{tpu_custom_call.1} parent=27 // pred_check
        %p1104 = pneg %p99
      $region30: #{tpu_custom_call.1} parent=27 // pred_check_branch
        %1106 = sbr.rel (%p1104) target = $region32
      $region31: #{tpu_custom_call.1} parent=27 // pred_region
        %s1107 = smul.u32 8, %s18
      $region32: #{tpu_custom_call.1} parent=27 // pred_fallthru
        _
    $region28: #{tpu_custom_call.1} parent=5 // pred_fallthru
      _
    %p1108 = scmp.le.s32.totalorder 2, %s8
    // Predicated region
    $region33: #{tpu_custom_call.1} parent=5 // pred_check
      %p1109 = pneg %p1108
    $region34: #{tpu_custom_call.1} parent=5 // pred_check_branch
      %1111 = sbr.rel (%p1109) target = $region36
    $region35: #{tpu_custom_call.1} parent=5 // pred_region
      %s1112 = ssub.s32 %s8, 2
      // Predicated region
      $region37: #{tpu_custom_call.1} parent=35 // pred_check
        %p1113 = pneg %p105
      $region38: #{tpu_custom_call.1} parent=35 // pred_check_branch
        %1115 = sbr.rel (%p1113) target = $region40
      $region39: #{tpu_custom_call.1} parent=35 // pred_region
        %s1116 = smul.u32 8, %s20
        %p1117 = scmp.lt.s32.totalorder %s19, 1
        %s1118 = scalar_select %p1117, %s19, 1
        %p1119 = scmp.lt.s32.totalorder %s1116, 7
        %s1120 = scalar_select %p1119, %s1116, 7
        %s1121 = smul.addr %s1120, 8
        %s1122 = smul.addr %s1118, 64
        %s1123 = sadd.s32 %s1121, %s1122
        %s1124 = smul.addr %s1123, 8
        %s1125 = scalar_lea.vmem %s2, %s1124
      $region40: #{tpu_custom_call.1} parent=35 // pred_fallthru
        _
    $region36: #{tpu_custom_call.1} parent=5 // pred_fallthru
      _
  $region6: #{tpu_custom_call.1} parent=0 // loop_footer
    %s12 = sadd.s32 1, %s8
  $region7: #{tpu_custom_call.1} parent=0 // loop_footer_branch
    %7 = sbr.rel target = $region3
  $region8: #{tpu_custom_call.1} parent=0 // loop_exit
    _

</llo_original>
